<compile_context>
chip_gen: v5e
topology: v5e:2x2
jax: 0.10.0
libtpu: 0.0.40
codegen_flags: <defaults>
</compile_context>

<pallas_src>
import jax
import jax.numpy as jnp
from jax.experimental import pallas as pl
from jax.experimental.pallas import tpu as pltpu


def _round_up(n, m):
    return ((n + m - 1) // m) * m


def _mlp_kernel(x_ref, w1_ref, b1_ref, w2_ref, b2_ref, w3_ref, b3_ref, o_ref):
    # Hidden layer 1: Linear + ReLU   (Dropout == identity in eval mode)
    h = jnp.dot(x_ref[...], w1_ref[...], preferred_element_type=jnp.float32)
    h = jnp.maximum(h + b1_ref[...], 0.0)          # b1 is f32, no per-step cast

    # Hidden layer 2: Linear + ReLU   (Dropout == identity in eval mode)
    h = jnp.dot(h.astype(w2_ref.dtype), w2_ref[...],
                preferred_element_type=jnp.float32)
    h = jnp.maximum(h + b2_ref[...], 0.0)

    # Output head Linear(H2, 1) + Sigmoid, computed transposed so the result is
    # lane-dense: contract w3 (1, H2) with h (TB, H2) on their last dims (NT dot)
    # -> logit (1, TB).  Dense sigmoid + unmasked vector stores, no (TB, 1) column.
    logit = jax.lax.dot_general(
        w3_ref[...], h.astype(w3_ref.dtype),
        dimension_numbers=(((1,), (1,)), ((), ())),
        preferred_element_type=jnp.float32)         # (1, TB)
    o_ref[...] = jax.nn.sigmoid(logit + b3_ref[...]).astype(o_ref.dtype)


def binary_classification_nn(x, params, *, block_b=4096):
    """x: (B, input_size). Weights stored as (in, out); biases as (1, out).
    Returns (B, 1) float32 probabilities."""
    B, F = x.shape
    w1, w2 = params["w1"], params["w2"]
    H1, H2 = w1.shape[1], w2.shape[1]
    # Biases stay f32 regardless of the weight/x dtype (tiny, VMEM-resident).
    b1 = params["b1"].astype(jnp.float32)
    b2 = params["b2"].astype(jnp.float32)
    b3 = params["b3"].astype(jnp.float32).reshape(1, 1)
    w3_row = params["w3"].reshape(1, H2)            # (H2, 1) -> (1, H2)

    # ---- Batch tile selection -------------------------------------------------
    # Large lane-aligned tiles amortize the ~0.35 us per-grid-step overhead and
    # keep the output stores lane-dense.  No padding of x: the final block is
    # clipped by Pallas and the tail rows are discarded by the [:B] slice below.
    if B < 256:
        TB = B                                      # single full-array block
    else:
        TB = min(block_b, _round_up(B, 128))        # lane-dense multiple of 128
        if pl.cdiv(B, TB) < 2:                      # >=2 steps so both v7x TCs work
            TB = _round_up(pl.cdiv(B, 2), 128)
    num_tiles = pl.cdiv(B, TB)
    # (An odd tile count leaves one v7x core with one extra tile; acceptable.)

    def resident(arr):  # DMA'd once, stays VMEM-resident across all grid steps
        return pl.BlockSpec(arr.shape, lambda i: (0, 0))

    bytes_accessed = int(
        x.size * x.dtype.itemsize
        + B * 4  # f32 output
        + sum(int(p.size * p.dtype.itemsize) for p in (w1, b1, w2, b2, w3_row, b3))
    )
    cost = pl.CostEstimate(
        flops=2 * B * (F * H1 + H1 * H2 + H2),
        transcendentals=B,                          # one sigmoid (exp) per row
        bytes_accessed=bytes_accessed,
    )

    out = pl.pallas_call(
        _mlp_kernel,
        out_shape=jax.ShapeDtypeStruct((num_tiles, TB), jnp.float32),
        grid=(num_tiles,),
        in_specs=[
            pl.BlockSpec((TB, F), lambda i: (i, 0)),   # x streamed per batch tile
            resident(w1), resident(b1),
            resident(w2), resident(b2),
            resident(w3_row), resident(b3),
        ],
        out_specs=pl.BlockSpec((1, TB), lambda i: (i, 0)),  # lane-dense row per tile
        compiler_params=pltpu.CompilerParams(
            dimension_semantics=("parallel",)        # shard batch tiles across TCs
        ),
        cost_estimate=cost,
    )(x, w1, b1, w2, b2, w3_row, b3)

    return out.reshape(num_tiles * TB, 1)[:B]


def init_params(key, input_size, hidden_layers):
    """Deterministic init mimicking nn.Linear's U(-1/sqrt(fan_in), 1/sqrt(fan_in)).
    Weights stored as (in, out) (transposed vs. PyTorch's (out, in))."""
    sizes = [input_size] + list(hidden_layers) + [1]
    params = {}
    for i, (fan_in, fan_out) in enumerate(zip(sizes[:-1], sizes[1:]), start=1):
        key, kw, kb = jax.random.split(key, 3)
        bound = 1.0 / (fan_in ** 0.5)
        params[f"w{i}"] = jax.random.uniform(
            kw, (fan_in, fan_out), jnp.float32, -bound, bound)
        params[f"b{i}"] = jax.random.uniform(
            kb, (1, fan_out), jnp.float32, -bound, bound)
    return params


if __name__ == "__main__":
    # Module config: input_size=32, hidden_layers=[64, 32], activation_fn=nn.ReLU,
    # dropout_rate=0.5 (identity in this eval-mode forward).
    input_size = 32
    hidden_layers = (64, 32)

    key = jax.random.PRNGKey(0)
    key, kx = jax.random.split(key)
    params = init_params(key, input_size, hidden_layers)

    def reference(xr, p):
        h = jnp.maximum(xr @ p["w1"] + p["b1"], 0.0)
        h = jnp.maximum(h @ p["w2"] + p["b2"], 0.0)
        return jax.nn.sigmoid(h @ p["w3"] + p["b3"])

    # --- 1) Small f32 run (single full-array block). ---------------------------
    batch = 8
    x = jax.random.normal(kx, (batch, input_size), dtype=jnp.float32)
    out = jax.block_until_ready(binary_classification_nn(x, params))
    assert out.shape == (batch, 1)
    assert bool(jnp.all((out >= 0.0) & (out <= 1.0)))
    ref = reference(x, params)
    assert bool(jnp.allclose(out, ref, atol=1e-5, rtol=1e-5)), "f32 mismatch"

    # --- 2) Multi-tile run: pipelined batch grid + clipped partial final block. -
    batch2 = 1000  # -> TB=512, 2 grid steps, second block clipped (no jnp.pad copy)
    key, kx2 = jax.random.split(key)
    x2 = jax.random.normal(kx2, (batch2, input_size), dtype=jnp.float32)
    out2 = jax.block_until_ready(binary_classification_nn(x2, params))
    assert out2.shape == (batch2, 1)
    ref2 = reference(x2, params)
    assert bool(jnp.allclose(out2, ref2, atol=1e-5, rtol=1e-5)), "multi-tile mismatch"

    # --- 3) bf16 x / weights (biases kept f32 by the wrapper): halves the
    #        dominant HBM stream; accumulation, sigmoid and output stay f32. ----
    params_bf16 = dict(params)
    for name in ("w1", "w2", "w3"):
        params_bf16[name] = params[name].astype(jnp.bfloat16)
    x_bf16 = x2.astype(jnp.bfloat16)
    out_bf16 = jax.block_until_ready(binary_classification_nn(x_bf16, params_bf16))
    ref_bf16 = reference(x_bf16.astype(jnp.float32),
                         {k: v.astype(jnp.float32) for k, v in params_bf16.items()})
    assert out_bf16.shape == (batch2, 1)
    assert bool(jnp.all((out_bf16 >= 0.0) & (out_bf16 <= 1.0)))
    assert bool(jnp.allclose(out_bf16, ref_bf16, atol=2e-2)), "bf16 mismatch"

    print("KERNEL_OK")
</pallas_src>

<mosaic_0001>
module attributes {stable_mosaic.version = 11 : i64} {
  func.func @_mlp_kernel(%arg0: i32, %arg1: memref<8x32xf32, #tpu.memory_space<vmem>>, %arg2: memref<32x64xf32, #tpu.memory_space<vmem>>, %arg3: memref<1x64xf32, #tpu.memory_space<vmem>>, %arg4: memref<64x32xf32, #tpu.memory_space<vmem>>, %arg5: memref<1x32xf32, #tpu.memory_space<vmem>>, %arg6: memref<1x32xf32, #tpu.memory_space<vmem>>, %arg7: memref<1x1xf32, #tpu.memory_space<vmem>>, %arg8: memref<1x8xf32, #tpu.memory_space<vmem>>) attributes {dimension_semantics = [#tpu.dimension_semantics<parallel>], iteration_bounds = array<i64: 1>, scalar_prefetch = 0 : i64, scratch_operands = 0 : i64, tpu.core_type = #tpu.core_type<tc>, window_params = [{transform_indices = @transform_0, window_bounds = array<i64: 8, 32>}, {pipeline_mode = #tpu.pipeline_mode<synchronous>, transform_indices = @transform_1, window_bounds = array<i64: 32, 64>}, {pipeline_mode = #tpu.pipeline_mode<synchronous>, transform_indices = @transform_2, window_bounds = array<i64: 1, 64>}, {pipeline_mode = #tpu.pipeline_mode<synchronous>, transform_indices = @transform_3, window_bounds = array<i64: 64, 32>}, {pipeline_mode = #tpu.pipeline_mode<synchronous>, transform_indices = @transform_4, window_bounds = array<i64: 1, 32>}, {pipeline_mode = #tpu.pipeline_mode<synchronous>, transform_indices = @transform_5, window_bounds = array<i64: 1, 32>}, {pipeline_mode = #tpu.pipeline_mode<synchronous>, transform_indices = @transform_6, window_bounds = array<i64: 1, 1>}, {transform_indices = @transform_7, window_bounds = array<i64: 1, 8>}]} {
    %c0 = arith.constant 0 : index
    %c0_0 = arith.constant 0 : index
    %0 = vector.load %arg1[%c0, %c0_0] : memref<8x32xf32, #tpu.memory_space<vmem>>, vector<8x32xf32>
    %c0_1 = arith.constant 0 : index
    %c0_2 = arith.constant 0 : index
    %1 = vector.load %arg2[%c0_1, %c0_2] : memref<32x64xf32, #tpu.memory_space<vmem>>, vector<32x64xf32>
    %cst = arith.constant dense<0.000000e+00> : vector<8x64xf32>
    %2 = tpu.matmul %0, %1, %cst {dimension_numbers = #tpu.dot_dimension_numbers<[1], [0], [0], [1], [0, 0, 1, 1], [], []>} : vector<8x32xf32>, vector<32x64xf32>, vector<8x64xf32> -> vector<8x64xf32>
    %c0_3 = arith.constant 0 : index
    %c0_4 = arith.constant 0 : index
    %3 = vector.load %arg3[%c0_3, %c0_4] : memref<1x64xf32, #tpu.memory_space<vmem>>, vector<1x64xf32>
    %4 = vector.broadcast %3 : vector<1x64xf32> to vector<8x64xf32>
    %5 = arith.addf %2, %4 : vector<8x64xf32>
    %cst_5 = arith.constant 0.000000e+00 : f32
    %6 = vector.broadcast %cst_5 : f32 to vector<8x64xf32>
    %7 = arith.maximumf %5, %6 : vector<8x64xf32>
    %c0_6 = arith.constant 0 : index
    %c0_7 = arith.constant 0 : index
    %8 = vector.load %arg4[%c0_6, %c0_7] : memref<64x32xf32, #tpu.memory_space<vmem>>, vector<64x32xf32>
    %cst_8 = arith.constant dense<0.000000e+00> : vector<8x32xf32>
    %9 = tpu.matmul %7, %8, %cst_8 {dimension_numbers = #tpu.dot_dimension_numbers<[1], [0], [0], [1], [0, 0, 1, 1], [], []>} : vector<8x64xf32>, vector<64x32xf32>, vector<8x32xf32> -> vector<8x32xf32>
    %c0_9 = arith.constant 0 : index
    %c0_10 = arith.constant 0 : index
    %10 = vector.load %arg5[%c0_9, %c0_10] : memref<1x32xf32, #tpu.memory_space<vmem>>, vector<1x32xf32>
    %11 = vector.broadcast %10 : vector<1x32xf32> to vector<8x32xf32>
    %12 = arith.addf %9, %11 : vector<8x32xf32>
    %cst_11 = arith.constant 0.000000e+00 : f32
    %13 = vector.broadcast %cst_11 : f32 to vector<8x32xf32>
    %14 = arith.maximumf %12, %13 : vector<8x32xf32>
    %c0_12 = arith.constant 0 : index
    %c0_13 = arith.constant 0 : index
    %15 = vector.load %arg6[%c0_12, %c0_13] : memref<1x32xf32, #tpu.memory_space<vmem>>, vector<1x32xf32>
    %cst_14 = arith.constant dense<0.000000e+00> : vector<1x8xf32>
    %16 = tpu.matmul %15, %14, %cst_14 {dimension_numbers = #tpu.dot_dimension_numbers<[1], [1], [0], [0], [0, 0, 1, 0], [], []>} : vector<1x32xf32>, vector<8x32xf32>, vector<1x8xf32> -> vector<1x8xf32>
    %c0_15 = arith.constant 0 : index
    %c0_16 = arith.constant 0 : index
    %17 = vector.load %arg7[%c0_15, %c0_16] : memref<1x1xf32, #tpu.memory_space<vmem>>, vector<1x1xf32>
    %18 = vector.broadcast %17 : vector<1x1xf32> to vector<1x8xf32>
    %19 = arith.addf %16, %18 : vector<1x8xf32>
    %20 = arith.negf %19 : vector<1x8xf32>
    %21 = math.exp %20 : vector<1x8xf32>
    %cst_17 = arith.constant 1.000000e+00 : f32
    %22 = vector.broadcast %cst_17 : f32 to vector<1x8xf32>
    %23 = arith.addf %22, %21 : vector<1x8xf32>
    %24 = arith.divf %22, %23 : vector<1x8xf32>
    %c0_18 = arith.constant 0 : index
    %c0_19 = arith.constant 0 : index
    %25 = vector.load %arg8[%c0_18, %c0_19] : memref<1x8xf32, #tpu.memory_space<vmem>>, vector<1x8xf32>
    tpu.vector_store %arg8[%c0_18, %c0_19], %24 {strides = array<i32>} : memref<1x8xf32, #tpu.memory_space<vmem>>, vector<1x8xf32>,
    return
  }
  func.func @transform_0(%arg0: i32) -> (i32, i32) {
    %c0_i32 = arith.constant 0 : i32
    %c0_i32_0 = arith.constant 0 : i32
    return %arg0, %c0_i32 : i32, i32
  }
  func.func @transform_1(%arg0: i32) -> (i32, i32) {
    %c0_i32 = arith.constant 0 : i32
    %c0_i32_0 = arith.constant 0 : i32
    %c0_i32_1 = arith.constant 0 : i32
    return %c0_i32, %c0_i32_0 : i32, i32
  }
  func.func @transform_2(%arg0: i32) -> (i32, i32) {
    %c0_i32 = arith.constant 0 : i32
    %c0_i32_0 = arith.constant 0 : i32
    %c0_i32_1 = arith.constant 0 : i32
    return %c0_i32, %c0_i32_0 : i32, i32
  }
  func.func @transform_3(%arg0: i32) -> (i32, i32) {
    %c0_i32 = arith.constant 0 : i32
    %c0_i32_0 = arith.constant 0 : i32
    %c0_i32_1 = arith.constant 0 : i32
    return %c0_i32, %c0_i32_0 : i32, i32
  }
  func.func @transform_4(%arg0: i32) -> (i32, i32) {
    %c0_i32 = arith.constant 0 : i32
    %c0_i32_0 = arith.constant 0 : i32
    %c0_i32_1 = arith.constant 0 : i32
    return %c0_i32, %c0_i32_0 : i32, i32
  }
  func.func @transform_5(%arg0: i32) -> (i32, i32) {
    %c0_i32 = arith.constant 0 : i32
    %c0_i32_0 = arith.constant 0 : i32
    %c0_i32_1 = arith.constant 0 : i32
    return %c0_i32, %c0_i32_0 : i32, i32
  }
  func.func @transform_6(%arg0: i32) -> (i32, i32) {
    %c0_i32 = arith.constant 0 : i32
    %c0_i32_0 = arith.constant 0 : i32
    %c0_i32_1 = arith.constant 0 : i32
    return %c0_i32, %c0_i32_0 : i32, i32
  }
  func.func @transform_7(%arg0: i32) -> (i32, i32) {
    %c0_i32 = arith.constant 0 : i32
    %c0_i32_0 = arith.constant 0 : i32
    return %arg0, %c0_i32 : i32, i32
  }
}

</mosaic_0001>

<llo_original>
// kernel: tpu_custom_call.1
$region0: #{tpu_custom_call.1}
  #allocation0 [shape = 'u32[]', space=smem, size = 0x4, offset = 0x4, fixed_abs, tag = 'smem constant byte address 0x4 - core index']
  #allocation1 [shape = 'u32[72,128]{1,0:T(1,128)}', space=vmem, size = 0x9000, scoped, tag = 'internal scratch']
  #allocation2 [shape = 'f32[1,1]{1,0:T(1,128)S(1)}', space=vmem, size = 0x200, scoped, tag = 'scoped memory for tpu_custom_call.1']
  %s0 = inlined_call_operand.vmem [shape: f32[8,32], index: 0, kind: input, shape index: {}]
  %s1 = inlined_call_operand.vmem [shape: f32[32,64], index: 1, kind: input, shape index: {}]
  %s2 = inlined_call_operand.vmem [shape: f32[1,64], index: 2, kind: input, shape index: {}]
  %s3 = inlined_call_operand.vmem [shape: f32[64,32], index: 3, kind: input, shape index: {}]
  %s4 = inlined_call_operand.vmem [shape: f32[1,32], index: 4, kind: input, shape index: {}]
  %s5 = inlined_call_operand.vmem [shape: f32[1,32], index: 5, kind: input, shape index: {}]
  %s6 = inlined_call_operand.<no memory space> [shape: f32[1,1], index: 6, kind: input, shape index: {}]
  %s7 = inlined_call_operand.hbm [shape: f32[1,8], index: 7, kind: output, shape index: {}]
  %s8 = sld [smem:[#allocation0]]
  $region38: #{tpu_custom_call.1} parent=0
    _
  %s10 = ssub.s32 1, %s8
  %s11 = scalar_select 0, %s10, %s8
  %v12 = vstv %s6
  %13 = vst [vmem:[#allocation2] sm:$0x1] %v12
  $region1: #{tpu_custom_call.1} parent=0
    #allocation3 [shape = 'u8[512]{0}', space=vmem, size = 0x400, scoped, tag = 'output window, operand 0, single buffered']
    #allocation4 [shape = 's32[1]{0}', space=sflag, size = 0x4, scoped, tag = 'scoped memory for tpu_custom_call.1']
    %14 = vsyncpa [#allocation4], 0
    // Predicated region
    $region2: #{tpu_custom_call.1} parent=1 // pred_check
      _
    $region3: #{tpu_custom_call.1} parent=1 // pred_check_branch
      %16 = sbr.rel (0) target = $region5
    $region4: #{tpu_custom_call.1} parent=1 // pred_region
      _
    $region5: #{tpu_custom_call.1} parent=1 // pred_fallthru
      _
    // Predicated region
    $region6: #{tpu_custom_call.1} parent=1 // pred_check
      _
    $region7: #{tpu_custom_call.1} parent=1 // pred_check_branch
      %18 = sbr.rel (0) target = $region9
    $region8: #{tpu_custom_call.1} parent=1 // pred_region
      _
    $region9: #{tpu_custom_call.1} parent=1 // pred_fallthru
      _
    // Predicated region
    $region10: #{tpu_custom_call.1} parent=1 // pred_check
      _
    $region11: #{tpu_custom_call.1} parent=1 // pred_check_branch
      %20 = sbr.rel (0) target = $region13
    $region12: #{tpu_custom_call.1} parent=1 // pred_region
      _
    $region13: #{tpu_custom_call.1} parent=1 // pred_fallthru
      _
    // Predicated region
    $region14: #{tpu_custom_call.1} parent=1 // pred_check
      _
    $region15: #{tpu_custom_call.1} parent=1 // pred_check_branch
      %22 = sbr.rel (0) target = $region17
    $region16: #{tpu_custom_call.1} parent=1 // pred_region
      _
    $region17: #{tpu_custom_call.1} parent=1 // pred_fallthru
      _
    // Predicated region
    $region18: #{tpu_custom_call.1} parent=1 // pred_check
      _
    $region19: #{tpu_custom_call.1} parent=1 // pred_check_branch
      %24 = sbr.rel (0) target = $region21
    $region20: #{tpu_custom_call.1} parent=1 // pred_region
      _
    $region21: #{tpu_custom_call.1} parent=1 // pred_fallthru
      _
    // Predicated region
    $region22: #{tpu_custom_call.1} parent=1 // pred_check
      _
    $region23: #{tpu_custom_call.1} parent=1 // pred_check_branch
      %26 = sbr.rel (0) target = $region25
    $region24: #{tpu_custom_call.1} parent=1 // pred_region
      _
    $region25: #{tpu_custom_call.1} parent=1 // pred_fallthru
      _
    // Predicated region
    $region26: #{tpu_custom_call.1} parent=1 // pred_check
      _
    $region27: #{tpu_custom_call.1} parent=1 // pred_check_branch
      %28 = sbr.rel (0) target = $region29
    $region28: #{tpu_custom_call.1} parent=1 // pred_region
      _
    $region29: #{tpu_custom_call.1} parent=1 // pred_fallthru
      _
    %v29 = vld [vmem:[%s0] sm:$0xff]
    %v30 = vld [vmem:[%s1] sm:$0xff]
    %v31 = vld [vmem:[%s1 + $0x8] sm:$0xff]
    %v32 = vld [vmem:[%s1 + $0x10] sm:$0xff]
    %v33 = vld [vmem:[%s1 + $0x18] sm:$0xff]
    %v34 = vld [vmem:[%s2] sm:$0x1]
    %v36 = vperm.slane %v34, 0
    %vm38 = vcmask 261120
    %v40 = vsel %vm38, %v29, 0
    %42 = vmatpush.msra.mxu0 0.0
    %43 = vmatpush.msra.mxu0 0.0
    %44 = vmatpush.msra.mxu0 0.0
    %45 = vmatpush.msra.mxu0 0.0
    %46 = vmatpush.msra.mxu0 0.0
    %47 = vmatpush.msra.mxu0 0.0
    %48 = vmatpush.msra.mxu0 0.0
    %49 = vmatpush.msra.mxu0 0.0
    %50 = vmatpush.msra.mxu0 0.0
    %51 = vmatpush.msra.mxu0 0.0
    %52 = vmatpush.msra.mxu0 0.0
    %53 = vmatpush.msra.mxu0 0.0
    %54 = vmatpush.msra.mxu0 %v33
    %55 = vmatpush.msra.mxu0 %v32
    %56 = vmatpush.msra.mxu0 %v31
    %57 = vmatpush.msra.mxu0 %v30
    %58 = vmatmul.f32.gmra.mxu0 %v40
    %v59 = vpop.f32.mrf.mxu0
    %v60 = vadd.f32 %v36, %v59
    %61 = vdwg.mxu0
    %v62 = vmax.f32 %v60, 0.0
    %v63 = vld [vmem:[%s3] sm:$0xff]
    %v64 = vld [vmem:[%s3 + $0x8] sm:$0xff]
    %v65 = vld [vmem:[%s3 + $0x10] sm:$0xff]
    %v66 = vld [vmem:[%s3 + $0x18] sm:$0xff]
    %v67 = vld [vmem:[%s3 + $0x20] sm:$0xff]
    %v68 = vld [vmem:[%s3 + $0x28] sm:$0xff]
    %v69 = vld [vmem:[%s3 + $0x30] sm:$0xff]
    %v70 = vld [vmem:[%s3 + $0x38] sm:$0xff]
    %v71 = vld [vmem:[%s4] sm:$0x1]
    %v73 = vperm.slane %v71, 0
    %vm75 = vcmask 523264
    %v77 = vsel %vm75, %v62, 0
    %79 = vmatpush.msra.mxu0 0.0
    %80 = vmatpush.msra.mxu0 0.0
    %81 = vmatpush.msra.mxu0 0.0
    %82 = vmatpush.msra.mxu0 0.0
    %83 = vmatpush.msra.mxu0 0.0
    %84 = vmatpush.msra.mxu0 0.0
    %85 = vmatpush.msra.mxu0 0.0
    %86 = vmatpush.msra.mxu0 0.0
    %87 = vmatpush.msra.mxu0 %v70
    %88 = vmatpush.msra.mxu0 %v69
    %89 = vmatpush.msra.mxu0 %v68
    %90 = vmatpush.msra.mxu0 %v67
    %91 = vmatpush.msra.mxu0 %v66
    %92 = vmatpush.msra.mxu0 %v65
    %93 = vmatpush.msra.mxu0 %v64
    %94 = vmatpush.msra.mxu0 %v63
    %95 = vmatmul.f32.gmra.mxu0 %v77
    %v96 = vpop.f32.mrf.mxu0
    %v97 = vadd.f32 %v73, %v96
    %98 = vdwg.mxu0
    %v99 = vmax.f32 %v97, 0.0
    %v100 = vld [vmem:[%s5] sm:$0x1]
    %v101 = vld [vmem:[#allocation2] sm:$0x1]
    %103 = vset.pattern.permute.xlu0 0
    %104 = vperm.xlu0 %103, %v101
    %v105 = vpop.permute.xlu0 %104
    %v107 = vperm.slane %v105, 0
    %v109 = vsel %vm38, %v100, 0
    %v112 = vsel %vm38, %v99, 0
    %114 = vmatpush.xpose.msra.mxu0 0.0
    %115 = vmatpush.xpose.msra.mxu0 0.0
    %116 = vmatpush.xpose.msra.mxu0 0.0
    %117 = vmatpush.xpose.msra.mxu0 0.0
    %118 = vmatpush.xpose.msra.mxu0 0.0
    %119 = vmatpush.xpose.msra.mxu0 0.0
    %120 = vmatpush.xpose.msra.mxu0 0.0
    %121 = vmatpush.xpose.msra.mxu0 0.0
    %122 = vmatpush.xpose.msra.mxu0 0.0
    %123 = vmatpush.xpose.msra.mxu0 0.0
    %124 = vmatpush.xpose.msra.mxu0 0.0
    %125 = vmatpush.xpose.msra.mxu0 0.0
    %126 = vmatpush.xpose.msra.mxu0 0.0
    %127 = vmatpush.xpose.msra.mxu0 0.0
    %128 = vmatpush.xpose.msra.mxu0 0.0
    %129 = vmatpush.xpose.msra.mxu0 %v112
    %130 = vmatmul.f32.gmra.mxu0 %v109
    %v131 = vpop.f32.mrf.mxu0
    %v132 = vadd.f32 %v107, %v131
    %133 = vdwg.mxu0
    %v134 = vxor.u32 %v132, 2147483648
    %v135 = vmul.f32 %v134, 1.442695
    %v136 = vpow.pop %v135
    %v137 = vadd.f32 %v136, 1.0
    %v138 = vrcp.pop %v137
    %v139 = vmul.f32 %v137, %v138
    %v140 = vsub.f32 1.0, %v139
    %v141 = vmul.f32 %v138, %v140
    %v142 = vadd.f32 %v138, %v141
    %vm143 = vweird.f32 %v137
    %vm144 = vweird.f32 %v138
    %vm145 = vmor %vm143, %vm144
    %v146 = vsel %vm145, %v138, %v142
    %v147 = vand.u32 2147483647, %v137
    %vm148 = vcmp.eq.f32.partialorder %v147, 8.507059e+37
    %v149 = vand.u32 %v137, 2147483648
    %v150 = vor.u32 1.1754944e-38, %v149
    %v151 = vsel %vm148, %v150, %v146
    %v152 = vmul.f32 1.0, %v151
    %vm153 = vcmask 57344
    %154 = vst.msk [vmem:[#allocation3] sm:$0x1] %vm153, %v152
    // Predicated region
    $region30: #{tpu_custom_call.1} parent=1 // pred_check
      _
    $region31: #{tpu_custom_call.1} parent=1 // pred_check_branch
      %156 = sbr.rel (0) target = $region33
    $region32: #{tpu_custom_call.1} parent=1 // pred_region
      %158 = vsyncadd [#allocation4], 0
      %s160 = sshll.u32 [#allocation3], 4
      %s161 = int_to_ptr.vmem [resolvable:$true] %s160
      %s162 = sshll.u32 %s7, 4
      %s163 = int_to_ptr.hbm [resolvable:$true] %s162
      %165 = dma.vmem_to_hbm [thread:$0]  %s161, 16, %s163, [#allocation4]
    $region33: #{tpu_custom_call.1} parent=1 // pred_fallthru
      _
    // Predicated region
    $region34: #{tpu_custom_call.1} parent=1 // pred_check
      _
    $region35: #{tpu_custom_call.1} parent=1 // pred_check_branch
      %167 = sbr.rel (0) target = $region37
    $region36: #{tpu_custom_call.1} parent=1 // pred_region
      %169 = dma.done [#allocation4], 16
    $region37: #{tpu_custom_call.1} parent=1 // pred_fallthru
      _
    %170 = vsyncpa [#allocation4], 1

</llo_original>
